<compile_context>
chip_gen: v7x
topology: tpu7x:2x2x1
jax: 0.10.0
libtpu: 0.0.40
codegen_flags: <defaults>
</compile_context>

<pallas_src>
import jax
import jax.numpy as jnp
from jax.experimental import pallas as pl
from jax.experimental.pallas import tpu as pltpu

_LANE = 128
_SUB = 8


def _round_up(x, m):
    return ((x + m - 1) // m) * m


# ---------------------------------------------------------------------------
# Kernel: fused 4-layer MLP + softmax over one batch tile.
# ---------------------------------------------------------------------------
def actor_kernel(x_ref, wi_ref, bi_ref, w1_ref, b1_ref,
                 w2_ref, b2_ref, wf_ref, bf_ref, o_ref):
    # f32 state is cast to bf16 here instead of in the wrapper (saves a full
    # HBM read+write pass over the largest streaming operand).
    x = x_ref[...].astype(jnp.bfloat16)

    # fci: plain linear, no activation (matches the reference module).
    h = jnp.dot(x, wi_ref[...], preferred_element_type=jnp.float32) + bi_ref[...]

    # fc1 + ReLU
    h = jnp.dot(h.astype(jnp.bfloat16), w1_ref[...],
                preferred_element_type=jnp.float32) + b1_ref[...]
    h = jnp.maximum(h, 0.0)

    # fc2 + LeakyReLU (torch default negative_slope = 0.01)
    h = jnp.dot(h.astype(jnp.bfloat16), w2_ref[...],
                preferred_element_type=jnp.float32) + b2_ref[...]
    h = jnp.where(h >= 0.0, h, 0.01 * h)

    # fcf + softmax along the action axis.  Padded action columns carry a
    # -1e30 bias, so exp() underflows to exactly 0 for them.
    logits = jnp.dot(h.astype(jnp.bfloat16), wf_ref[...],
                     preferred_element_type=jnp.float32) + bf_ref[...]
    m = jnp.max(logits, axis=-1, keepdims=True)
    e = jnp.exp(logits - m)
    denom = jnp.sum(e, axis=-1, keepdims=True)
    # Exact f32 divide: these probabilities feed categorical sampling /
    # log-prob / entropy terms in A2C, so each row must sum to 1.
    o_ref[...] = (e / denom).astype(o_ref.dtype)


# ---------------------------------------------------------------------------
# One-time parameter preparation (hoisted out of the per-step forward).
# ---------------------------------------------------------------------------
def prepare_actor_params(params):
    """Pad all params to lane multiples and cast weights to bf16 ONCE."""
    state_dim, hidden_dim = params["wi"].shape
    action_dim = params["wf"].shape[1]
    sd_p = _round_up(state_dim, _LANE)
    hd_p = _round_up(hidden_dim, _LANE)
    ad_p = _round_up(action_dim, _LANE)

    def pad2(a, rows, cols, fill=0.0):
        a = jnp.asarray(a, jnp.float32)
        return jnp.pad(a, ((0, rows - a.shape[0]), (0, cols - a.shape[1])),
                       constant_values=fill)

    padded = dict(
        wi=pad2(params["wi"], sd_p, hd_p).astype(jnp.bfloat16),
        w1=pad2(params["w1"], hd_p, hd_p).astype(jnp.bfloat16),
        w2=pad2(params["w2"], hd_p, hd_p).astype(jnp.bfloat16),
        wf=pad2(params["wf"], hd_p, ad_p).astype(jnp.bfloat16),
        bi=pad2(params["bi"], 1, hd_p),
        b1=pad2(params["b1"], 1, hd_p),
        b2=pad2(params["b2"], 1, hd_p),
        bf=pad2(params["bf"], 1, ad_p, fill=-1e30),
    )
    padded = {k: jax.block_until_ready(v) for k, v in padded.items()}
    dims = dict(state_dim=state_dim, hidden_dim=hidden_dim, action_dim=action_dim,
                sd_p=sd_p, hd_p=hd_p, ad_p=ad_p)
    return padded, dims


# ---------------------------------------------------------------------------
# Tiling / budget helpers.
# ---------------------------------------------------------------------------
def _batch_tiling(B, block_b_cap):
    """Pick (padded_batch, tile_rows) with minimal padding waste.

    B <= 128: single tile, batch padded only to a sublane multiple (8).
    B  > 128: batch padded to a 128 multiple; tile is a divisor of it
              (no dead full tiles) and we force >= 2 tiles so v7x's two
              TensorCores both get work via the "parallel" grid axis.
    """
    if B <= _LANE:
        b_p = _round_up(max(B, _SUB), _SUB)
        return b_p, b_p
    b_p = _round_up(B, _LANE)
    n = b_p // _LANE                                    # 128-row groups
    cap = max(1, min(block_b_cap // _LANE, n // 2))     # >= 2 tiles
    rows = cap
    while n % rows:
        rows -= 1
    return b_p, rows * _LANE


def _vmem_limit_bytes():
    """~3/4 of physical VMEM (96 MiB on v5e/v6e, 48 MiB on v7x); safe fallback."""
    try:
        cap = pltpu.get_tpu_info().vmem_capacity_bytes
        return int(min(96 * 1024 * 1024, (cap * 3) // 4))
    except Exception:
        return 32 * 1024 * 1024


def _resident_spec(shape, index_map):
    """Constant-index weight/bias spec; single-buffered where supported."""
    try:
        return pl.BlockSpec(shape, index_map, pipeline_mode=pl.Buffered(1))
    except Exception:  # older jax without pipeline_mode / Buffered
        return pl.BlockSpec(shape, index_map)


# ---------------------------------------------------------------------------
# Forward wrapper (hot path).
# ---------------------------------------------------------------------------
def actor_forward(state, padded_params, dims, *, block_b=512):
    """state: (B, state_dim) f32. padded_params/dims from prepare_actor_params."""
    B, state_dim = state.shape
    assert state_dim == dims["state_dim"]
    sd_p, hd_p, ad_p = dims["sd_p"], dims["hd_p"], dims["ad_p"]

    b_p, blk = _batch_tiling(B, block_b)

    # Zero-pad batch/feature dims only if misaligned; bf16 cast is in-kernel.
    x = state
    if (b_p, sd_p) != (B, state_dim):
        x = jnp.pad(state, ((0, b_p - B), (0, sd_p - state_dim)))

    grid = (b_p // blk,)

    def rows(i):       # batch-tiled arrays
        return (i, 0)

    def whole(i):      # weights / biases resident across all batch tiles
        return (0, 0)

    p = padded_params
    out = pl.pallas_call(
        actor_kernel,
        out_shape=jax.ShapeDtypeStruct((b_p, ad_p), jnp.float32),
        grid=grid,
        in_specs=[
            pl.BlockSpec((blk, sd_p), rows),
            _resident_spec((sd_p, hd_p), whole),
            _resident_spec((1, hd_p), whole),
            _resident_spec((hd_p, hd_p), whole),
            _resident_spec((1, hd_p), whole),
            _resident_spec((hd_p, hd_p), whole),
            _resident_spec((1, hd_p), whole),
            _resident_spec((hd_p, ad_p), whole),
            _resident_spec((1, ad_p), whole),
        ],
        out_specs=pl.BlockSpec((blk, ad_p), rows),
        compiler_params=pltpu.CompilerParams(
            dimension_semantics=("parallel",),
            vmem_limit_bytes=_vmem_limit_bytes()),
    )(x, p["wi"], p["bi"], p["w1"], p["b1"], p["w2"], p["b2"], p["wf"], p["bf"])

    return out[:B, :dims["action_dim"]]


# ---------------------------------------------------------------------------
# Init + references.
# ---------------------------------------------------------------------------
def init_params(key, state_dim, action_dim, hidden_dim):
    """Deterministic init matching torch.nn.Linear shapes (stored as (in,out))."""
    ks = jax.random.split(key, 8)

    def linear(kw, kb, fan_in, fan_out):
        bound = 1.0 / jnp.sqrt(fan_in)
        w = jax.random.uniform(kw, (fan_in, fan_out), jnp.float32, -bound, bound)
        b = jax.random.uniform(kb, (1, fan_out), jnp.float32, -bound, bound)
        return w, b

    wi, bi = linear(ks[0], ks[1], state_dim, hidden_dim)
    w1, b1 = linear(ks[2], ks[3], hidden_dim, hidden_dim)
    w2, b2 = linear(ks[4], ks[5], hidden_dim, hidden_dim)
    wf, bf = linear(ks[6], ks[7], hidden_dim, action_dim)
    return dict(wi=wi, bi=bi, w1=w1, b1=b1, w2=w2, b2=b2, wf=wf, bf=bf)


def actor_forward_ref_f32(state, p):
    """Pure-f32 semantic reference (mirrors the PyTorch module exactly)."""
    h = state @ p["wi"] + p["bi"]
    h = jax.nn.relu(h @ p["w1"] + p["b1"])
    h = jax.nn.leaky_relu(h @ p["w2"] + p["b2"], negative_slope=0.01)
    return jax.nn.softmax(h @ p["wf"] + p["bf"], axis=-1)


def actor_forward_ref_bf16(state, p):
    """Reference mirroring the kernel's bf16-operand / f32-accumulate numerics."""
    def mm(a, w):
        return jnp.dot(a.astype(jnp.bfloat16), w.astype(jnp.bfloat16),
                       preferred_element_type=jnp.float32)
    h = mm(state, p["wi"]) + p["bi"]
    h = jax.nn.relu(mm(h, p["w1"]) + p["b1"])
    h = jax.nn.leaky_relu(mm(h, p["w2"]) + p["b2"], negative_slope=0.01)
    return jax.nn.softmax(mm(h, p["wf"]) + p["bf"], axis=-1)


if __name__ == "__main__":
    state_dim, action_dim, hidden_dim = 16, 4, 32
    batch = 16

    key = jax.random.PRNGKey(0)
    k_params, k_state = jax.random.split(key)
    params = init_params(k_params, state_dim, action_dim, hidden_dim)
    state = jax.random.normal(k_state, (batch, state_dim), jnp.float32)

    # Parameter padding / bf16 cast executed ONCE, outside the hot path.
    padded, dims = prepare_actor_params(params)

    # Hot path: jitted forward closing over the prepared (already padded) params.
    fwd = jax.jit(lambda s: actor_forward(s, padded, dims))
    out = jax.block_until_ready(fwd(state))

    ref_mirror = actor_forward_ref_bf16(state, params)
    ref_exact = actor_forward_ref_f32(state, params)

    assert out.shape == (batch, action_dim)
    # Tight check against the numerics-mirroring reference.
    assert bool(jnp.allclose(out, ref_mirror, atol=5e-3, rtol=5e-3))
    # Loose check against the pure-f32 PyTorch-equivalent reference.
    assert bool(jnp.allclose(out, ref_exact, atol=5e-2, rtol=5e-2))
    # Exact softmax divide: probabilities sum to 1 at f32 precision.
    assert bool(jnp.allclose(jnp.sum(out, axis=-1), 1.0, atol=1e-5))

    print("KERNEL_OK")
</pallas_src>

<mosaic_0001>
module attributes {stable_mosaic.version = 11 : i64} {
  func.func @actor_kernel(%arg0: i32, %arg1: memref<16x128xf32, #tpu.memory_space<vmem>>, %arg2: memref<128x128xbf16, #tpu.memory_space<vmem>>, %arg3: memref<1x128xf32, #tpu.memory_space<vmem>>, %arg4: memref<128x128xbf16, #tpu.memory_space<vmem>>, %arg5: memref<1x128xf32, #tpu.memory_space<vmem>>, %arg6: memref<128x128xbf16, #tpu.memory_space<vmem>>, %arg7: memref<1x128xf32, #tpu.memory_space<vmem>>, %arg8: memref<128x128xbf16, #tpu.memory_space<vmem>>, %arg9: memref<1x128xf32, #tpu.memory_space<vmem>>, %arg10: memref<16x128xf32, #tpu.memory_space<vmem>>) attributes {dimension_semantics = [#tpu.dimension_semantics<parallel>], iteration_bounds = array<i64: 1>, scalar_prefetch = 0 : i64, scratch_operands = 0 : i64, tpu.core_type = #tpu.core_type<tc>, window_params = [{transform_indices = @transform_0, window_bounds = array<i64: 16, 128>}, {pipeline_mode = #tpu.pipeline_mode<synchronous>, transform_indices = @transform_1, window_bounds = array<i64: 128, 128>}, {pipeline_mode = #tpu.pipeline_mode<synchronous>, transform_indices = @transform_2, window_bounds = array<i64: 1, 128>}, {pipeline_mode = #tpu.pipeline_mode<synchronous>, transform_indices = @transform_3, window_bounds = array<i64: 128, 128>}, {pipeline_mode = #tpu.pipeline_mode<synchronous>, transform_indices = @transform_4, window_bounds = array<i64: 1, 128>}, {pipeline_mode = #tpu.pipeline_mode<synchronous>, transform_indices = @transform_5, window_bounds = array<i64: 128, 128>}, {pipeline_mode = #tpu.pipeline_mode<synchronous>, transform_indices = @transform_6, window_bounds = array<i64: 1, 128>}, {pipeline_mode = #tpu.pipeline_mode<synchronous>, transform_indices = @transform_7, window_bounds = array<i64: 128, 128>}, {pipeline_mode = #tpu.pipeline_mode<synchronous>, transform_indices = @transform_8, window_bounds = array<i64: 1, 128>}, {transform_indices = @transform_9, window_bounds = array<i64: 16, 128>}]} {
    %c0 = arith.constant 0 : index
    %c0_0 = arith.constant 0 : index
    %0 = vector.load %arg1[%c0, %c0_0] : memref<16x128xf32, #tpu.memory_space<vmem>>, vector<16x128xf32>
    %1 = arith.truncf %0 : vector<16x128xf32> to vector<16x128xbf16>
    %c0_1 = arith.constant 0 : index
    %c0_2 = arith.constant 0 : index
    %2 = vector.load %arg2[%c0_1, %c0_2] : memref<128x128xbf16, #tpu.memory_space<vmem>>, vector<128x128xbf16>
    %cst = arith.constant dense<0.000000e+00> : vector<16x128xf32>
    %3 = tpu.matmul %1, %2, %cst {dimension_numbers = #tpu.dot_dimension_numbers<[1], [0], [0], [1], [0, 0, 1, 1], [], []>} : vector<16x128xbf16>, vector<128x128xbf16>, vector<16x128xf32> -> vector<16x128xf32>
    %c0_3 = arith.constant 0 : index
    %c0_4 = arith.constant 0 : index
    %4 = vector.load %arg3[%c0_3, %c0_4] : memref<1x128xf32, #tpu.memory_space<vmem>>, vector<1x128xf32>
    %5 = vector.broadcast %4 : vector<1x128xf32> to vector<16x128xf32>
    %6 = arith.addf %3, %5 : vector<16x128xf32>
    %7 = arith.truncf %6 : vector<16x128xf32> to vector<16x128xbf16>
    %c0_5 = arith.constant 0 : index
    %c0_6 = arith.constant 0 : index
    %8 = vector.load %arg4[%c0_5, %c0_6] : memref<128x128xbf16, #tpu.memory_space<vmem>>, vector<128x128xbf16>
    %cst_7 = arith.constant dense<0.000000e+00> : vector<16x128xf32>
    %9 = tpu.matmul %7, %8, %cst_7 {dimension_numbers = #tpu.dot_dimension_numbers<[1], [0], [0], [1], [0, 0, 1, 1], [], []>} : vector<16x128xbf16>, vector<128x128xbf16>, vector<16x128xf32> -> vector<16x128xf32>
    %c0_8 = arith.constant 0 : index
    %c0_9 = arith.constant 0 : index
    %10 = vector.load %arg5[%c0_8, %c0_9] : memref<1x128xf32, #tpu.memory_space<vmem>>, vector<1x128xf32>
    %11 = vector.broadcast %10 : vector<1x128xf32> to vector<16x128xf32>
    %12 = arith.addf %9, %11 : vector<16x128xf32>
    %cst_10 = arith.constant 0.000000e+00 : f32
    %13 = vector.broadcast %cst_10 : f32 to vector<16x128xf32>
    %14 = arith.maximumf %12, %13 : vector<16x128xf32>
    %15 = arith.truncf %14 : vector<16x128xf32> to vector<16x128xbf16>
    %c0_11 = arith.constant 0 : index
    %c0_12 = arith.constant 0 : index
    %16 = vector.load %arg6[%c0_11, %c0_12] : memref<128x128xbf16, #tpu.memory_space<vmem>>, vector<128x128xbf16>
    %cst_13 = arith.constant dense<0.000000e+00> : vector<16x128xf32>
    %17 = tpu.matmul %15, %16, %cst_13 {dimension_numbers = #tpu.dot_dimension_numbers<[1], [0], [0], [1], [0, 0, 1, 1], [], []>} : vector<16x128xbf16>, vector<128x128xbf16>, vector<16x128xf32> -> vector<16x128xf32>
    %c0_14 = arith.constant 0 : index
    %c0_15 = arith.constant 0 : index
    %18 = vector.load %arg7[%c0_14, %c0_15] : memref<1x128xf32, #tpu.memory_space<vmem>>, vector<1x128xf32>
    %19 = vector.broadcast %18 : vector<1x128xf32> to vector<16x128xf32>
    %20 = arith.addf %17, %19 : vector<16x128xf32>
    %cst_16 = arith.constant 0.000000e+00 : f32
    %21 = vector.broadcast %cst_16 : f32 to vector<16x128xf32>
    %22 = arith.cmpf oge, %20, %21 : vector<16x128xf32>
    %cst_17 = arith.constant 0.00999999977 : f32
    %23 = vector.broadcast %cst_17 : f32 to vector<16x128xf32>
    %24 = arith.mulf %23, %20 : vector<16x128xf32>
    %25 = arith.select %22, %20, %24 : vector<16x128xi1>, vector<16x128xf32>
    %26 = arith.truncf %25 : vector<16x128xf32> to vector<16x128xbf16>
    %c0_18 = arith.constant 0 : index
    %c0_19 = arith.constant 0 : index
    %27 = vector.load %arg8[%c0_18, %c0_19] : memref<128x128xbf16, #tpu.memory_space<vmem>>, vector<128x128xbf16>
    %cst_20 = arith.constant dense<0.000000e+00> : vector<16x128xf32>
    %28 = tpu.matmul %26, %27, %cst_20 {dimension_numbers = #tpu.dot_dimension_numbers<[1], [0], [0], [1], [0, 0, 1, 1], [], []>} : vector<16x128xbf16>, vector<128x128xbf16>, vector<16x128xf32> -> vector<16x128xf32>
    %c0_21 = arith.constant 0 : index
    %c0_22 = arith.constant 0 : index
    %29 = vector.load %arg9[%c0_21, %c0_22] : memref<1x128xf32, #tpu.memory_space<vmem>>, vector<1x128xf32>
    %30 = vector.broadcast %29 : vector<1x128xf32> to vector<16x128xf32>
    %31 = arith.addf %28, %30 : vector<16x128xf32>
    %cst_23 = arith.constant dense<0xFF800000> : vector<16xf32>
    %32 = vector.multi_reduction <maximumf>, %31, %cst_23 [1] : vector<16x128xf32> to vector<16xf32>
    %33 = vector.shape_cast %32 : vector<16xf32> to vector<16x1xf32>
    %34 = vector.broadcast %33 : vector<16x1xf32> to vector<16x128xf32>
    %35 = arith.subf %31, %34 : vector<16x128xf32>
    %36 = math.exp %35 : vector<16x128xf32>
    %cst_24 = arith.constant dense<0.000000e+00> : vector<16xf32>
    %37 = vector.multi_reduction <add>, %36, %cst_24 [1] : vector<16x128xf32> to vector<16xf32>
    %38 = vector.shape_cast %37 : vector<16xf32> to vector<16x1xf32>
    %39 = vector.broadcast %38 : vector<16x1xf32> to vector<16x128xf32>
    %40 = arith.divf %36, %39 : vector<16x128xf32>
    %c0_25 = arith.constant 0 : index
    %c0_26 = arith.constant 0 : index
    %41 = vector.load %arg10[%c0_25, %c0_26] : memref<16x128xf32, #tpu.memory_space<vmem>>, vector<16x128xf32>
    tpu.vector_store %arg10[%c0_25, %c0_26], %40 {strides = array<i32>} : memref<16x128xf32, #tpu.memory_space<vmem>>, vector<16x128xf32>,
    return
  }
  func.func @transform_0(%arg0: i32) -> (i32, i32) {
    %c0_i32 = arith.constant 0 : i32
    %c0_i32_0 = arith.constant 0 : i32
    return %arg0, %c0_i32 : i32, i32
  }
  func.func @transform_1(%arg0: i32) -> (i32, i32) {
    %c0_i32 = arith.constant 0 : i32
    %c0_i32_0 = arith.constant 0 : i32
    %c0_i32_1 = arith.constant 0 : i32
    return %c0_i32, %c0_i32_0 : i32, i32
  }
  func.func @transform_2(%arg0: i32) -> (i32, i32) {
    %c0_i32 = arith.constant 0 : i32
    %c0_i32_0 = arith.constant 0 : i32
    %c0_i32_1 = arith.constant 0 : i32
    return %c0_i32, %c0_i32_0 : i32, i32
  }
  func.func @transform_3(%arg0: i32) -> (i32, i32) {
    %c0_i32 = arith.constant 0 : i32
    %c0_i32_0 = arith.constant 0 : i32
    %c0_i32_1 = arith.constant 0 : i32
    return %c0_i32, %c0_i32_0 : i32, i32
  }
  func.func @transform_4(%arg0: i32) -> (i32, i32) {
    %c0_i32 = arith.constant 0 : i32
    %c0_i32_0 = arith.constant 0 : i32
    %c0_i32_1 = arith.constant 0 : i32
    return %c0_i32, %c0_i32_0 : i32, i32
  }
  func.func @transform_5(%arg0: i32) -> (i32, i32) {
    %c0_i32 = arith.constant 0 : i32
    %c0_i32_0 = arith.constant 0 : i32
    %c0_i32_1 = arith.constant 0 : i32
    return %c0_i32, %c0_i32_0 : i32, i32
  }
  func.func @transform_6(%arg0: i32) -> (i32, i32) {
    %c0_i32 = arith.constant 0 : i32
    %c0_i32_0 = arith.constant 0 : i32
    %c0_i32_1 = arith.constant 0 : i32
    return %c0_i32, %c0_i32_0 : i32, i32
  }
  func.func @transform_7(%arg0: i32) -> (i32, i32) {
    %c0_i32 = arith.constant 0 : i32
    %c0_i32_0 = arith.constant 0 : i32
    %c0_i32_1 = arith.constant 0 : i32
    return %c0_i32, %c0_i32_0 : i32, i32
  }
  func.func @transform_8(%arg0: i32) -> (i32, i32) {
    %c0_i32 = arith.constant 0 : i32
    %c0_i32_0 = arith.constant 0 : i32
    %c0_i32_1 = arith.constant 0 : i32
    return %c0_i32, %c0_i32_0 : i32, i32
  }
  func.func @transform_9(%arg0: i32) -> (i32, i32) {
    %c0_i32 = arith.constant 0 : i32
    %c0_i32_0 = arith.constant 0 : i32
    return %arg0, %c0_i32 : i32, i32
  }
}

</mosaic_0001>

<llo_original>
// kernel: _lambda_.1
$region0: #{_lambda_.1}
  #allocation0 [shape = 'u32[]', space=smem, size = 0x4, offset = 0x4, fixed_abs, tag = 'smem constant byte address 0x4 - core index']
  #allocation1 [shape = 'u32[144,128]{1,0:T(1,128)}', space=vmem, size = 0x12000, scoped, tag = 'internal scratch']
  %s0 = inlined_call_operand.vmem [shape: f32[16,128], index: 0, kind: input, shape index: {}]
  %s1 = inlined_call_operand.hbm [shape: bf16[128,128], index: 1, kind: input, shape index: {}]
  %s2 = inlined_call_operand.vmem [shape: f32[1,128], index: 2, kind: input, shape index: {}]
  %s3 = inlined_call_operand.hbm [shape: bf16[128,128], index: 3, kind: input, shape index: {}]
  %s4 = inlined_call_operand.vmem [shape: f32[1,128], index: 4, kind: input, shape index: {}]
  %s5 = inlined_call_operand.hbm [shape: bf16[128,128], index: 5, kind: input, shape index: {}]
  %s6 = inlined_call_operand.vmem [shape: f32[1,128], index: 6, kind: input, shape index: {}]
  %s7 = inlined_call_operand.vmem [shape: bf16[128,128], index: 7, kind: input, shape index: {}]
  %s8 = inlined_call_operand.vmem [shape: f32[1,128], index: 8, kind: input, shape index: {}]
  %s9 = inlined_call_operand.vmem [shape: f32[16,128], index: 9, kind: output, shape index: {}]
  %s10 = sld [smem:[#allocation0]]
  $region58: #{_lambda_.1} parent=0
    _
  %s12 = ssub.s32 1, %s10
  %s13 = scalar_select 0, %s12, %s10
  $region1: #{_lambda_.1} parent=0
    #allocation2 [shape = 'u8[32768]{0}', space=vmem, size = 0x8000, scoped, tag = 'input window, operand 1, single buffered']
    #allocation3 [shape = 's32[1]{0}', space=sflag, size = 0x4, scoped, tag = 'scoped memory for _lambda_.1']
    #allocation4 [shape = 'u8[32768]{0}', space=vmem, size = 0x8000, scoped, tag = 'input window, operand 3, single buffered']
    #allocation5 [shape = 's32[1]{0}', space=sflag, size = 0x4, scoped, tag = 'scoped memory for _lambda_.1']
    #allocation6 [shape = 'u8[32768]{0}', space=vmem, size = 0x8000, scoped, tag = 'input window, operand 5, single buffered']
    %14 = vsyncpa [#allocation3], 0
    %15 = vsyncpa [#allocation5], 0
    // Predicated region
    $region2: #{_lambda_.1} parent=1 // pred_check
      _
    $region3: #{_lambda_.1} parent=1 // pred_check_branch
      %17 = sbr.rel (0) target = $region5
    $region4: #{_lambda_.1} parent=1 // pred_region
      _
    $region5: #{_lambda_.1} parent=1 // pred_fallthru
      _
    // Predicated region
    $region6: #{_lambda_.1} parent=1 // pred_check
      _
    $region7: #{_lambda_.1} parent=1 // pred_check_branch
      %19 = sbr.rel (0) target = $region9
    $region8: #{_lambda_.1} parent=1 // pred_region
      %s21 = ssub.s32 1024, 1024
      %22 = vsyncadd [#allocation3], %s21
      %s23 = sshll.u32 [#allocation2], 4
      %s24 = int_to_ptr.vmem [resolvable:$true] %s23
      %29 = dma.hbm_to_vmem [thread:$0]  %s1, 1024, %s24, [#allocation3], 64, 64, 4
    $region9: #{_lambda_.1} parent=1 // pred_fallthru
      _
    // Predicated region
    $region10: #{_lambda_.1} parent=1 // pred_check
      _
    $region11: #{_lambda_.1} parent=1 // pred_check_branch
      %31 = sbr.rel (0) target = $region13
    $region12: #{_lambda_.1} parent=1 // pred_region
      _
    $region13: #{_lambda_.1} parent=1 // pred_fallthru
      _
    // Predicated region
    $region14: #{_lambda_.1} parent=1 // pred_check
      _
    $region15: #{_lambda_.1} parent=1 // pred_check_branch
      %33 = sbr.rel (0) target = $region17
    $region16: #{_lambda_.1} parent=1 // pred_region
      %s35 = ssub.s32 1024, 1024
      %36 = vsyncadd [#allocation5], %s35
      %s37 = sshll.u32 [#allocation4], 4
      %s38 = int_to_ptr.vmem [resolvable:$true] %s37
      %43 = dma.hbm_to_vmem [thread:$0]  %s3, 1024, %s38, [#allocation5], 64, 64, 4
    $region17: #{_lambda_.1} parent=1 // pred_fallthru
      _
    // Predicated region
    $region18: #{_lambda_.1} parent=1 // pred_check
      _
    $region19: #{_lambda_.1} parent=1 // pred_check_branch
      %45 = sbr.rel (0) target = $region21
    $region20: #{_lambda_.1} parent=1 // pred_region
      _
    $region21: #{_lambda_.1} parent=1 // pred_fallthru
      _
    // Predicated region
    $region22: #{_lambda_.1} parent=1 // pred_check
      _
    $region23: #{_lambda_.1} parent=1 // pred_check_branch
      %47 = sbr.rel (0) target = $region25
    $region24: #{_lambda_.1} parent=1 // pred_region
      %s49 = ssub.s32 1024, 1024
      %50 = vsyncadd [#allocation5], %s49
      %s51 = sshll.u32 [#allocation6], 4
      %s52 = int_to_ptr.vmem [resolvable:$true] %s51
      %57 = dma.hbm_to_vmem [thread:$0]  %s5, 1024, %s52, [#allocation5], 64, 64, 4
    $region25: #{_lambda_.1} parent=1 // pred_fallthru
      _
    // Predicated region
    $region26: #{_lambda_.1} parent=1 // pred_check
      _
    $region27: #{_lambda_.1} parent=1 // pred_check_branch
      %59 = sbr.rel (0) target = $region29
    $region28: #{_lambda_.1} parent=1 // pred_region
      _
    $region29: #{_lambda_.1} parent=1 // pred_fallthru
      _
    // Predicated region
    $region30: #{_lambda_.1} parent=1 // pred_check
      _
    $region31: #{_lambda_.1} parent=1 // pred_check_branch
      %61 = sbr.rel (0) target = $region33
    $region32: #{_lambda_.1} parent=1 // pred_region
      _
    $region33: #{_lambda_.1} parent=1 // pred_fallthru
      _
    // Predicated region
    $region34: #{_lambda_.1} parent=1 // pred_check
      _
    $region35: #{_lambda_.1} parent=1 // pred_check_branch
      %63 = sbr.rel (0) target = $region37
    $region36: #{_lambda_.1} parent=1 // pred_region
      _
    $region37: #{_lambda_.1} parent=1 // pred_fallthru
      _
    // Predicated region
    $region38: #{_lambda_.1} parent=1 // pred_check
      _
    $region39: #{_lambda_.1} parent=1 // pred_check_branch
      %65 = sbr.rel (0) target = $region41
    $region40: #{_lambda_.1} parent=1 // pred_region
      %66 = dma.done [#allocation3], 1024
    $region41: #{_lambda_.1} parent=1 // pred_fallthru
      _
    // Predicated region
    $region42: #{_lambda_.1} parent=1 // pred_check
      _
    $region43: #{_lambda_.1} parent=1 // pred_check_branch
      %68 = sbr.rel (0) target = $region45
    $region44: #{_lambda_.1} parent=1 // pred_region
      %69 = dma.done [#allocation5], 1024
    $region45: #{_lambda_.1} parent=1 // pred_fallthru
      _
    // Predicated region
    $region46: #{_lambda_.1} parent=1 // pred_check
      _
    $region47: #{_lambda_.1} parent=1 // pred_check_branch
      %71 = sbr.rel (0) target = $region49
    $region48: #{_lambda_.1} parent=1 // pred_region
      %72 = dma.done [#allocation5], 1024
    $region49: #{_lambda_.1} parent=1 // pred_fallthru
      _
    %v74 = vld [vmem:[%s0] sm:$0xff]
    %v75 = vld [vmem:[%s0 + $0x8] sm:$0xff]
    %v76 = vpack.c.bf16 %v75, %v74
    %v77 = vld [vmem:[#allocation2] sm:$0xf]
    %v78 = vld [vmem:[#allocation2 + $0x4] sm:$0xf]
    %v79 = vld [vmem:[#allocation2 + $0x8] sm:$0xf]
    %v80 = vld [vmem:[#allocation2 + $0xc] sm:$0xf]
    %v81 = vld [vmem:[#allocation2 + $0x10] sm:$0xf]
    %v82 = vld [vmem:[#allocation2 + $0x14] sm:$0xf]
    %v83 = vld [vmem:[#allocation2 + $0x18] sm:$0xf]
    %v84 = vld [vmem:[#allocation2 + $0x1c] sm:$0xf]
    %v85 = vld [vmem:[#allocation2 + $0x20] sm:$0xf]
    %v86 = vld [vmem:[#allocation2 + $0x24] sm:$0xf]
    %v87 = vld [vmem:[#allocation2 + $0x28] sm:$0xf]
    %v88 = vld [vmem:[#allocation2 + $0x2c] sm:$0xf]
    %v89 = vld [vmem:[#allocation2 + $0x30] sm:$0xf]
    %v90 = vld [vmem:[#allocation2 + $0x34] sm:$0xf]
    %v91 = vld [vmem:[#allocation2 + $0x38] sm:$0xf]
    %v92 = vld [vmem:[#allocation2 + $0x3c] sm:$0xf]
    %v93 = vld [vmem:[%s2] sm:$0x1]
    %v95 = vlaneseq
    %v96 = vshrl.u32 %v95, 7
    %v97 = vsub.s32 0, %v96
    %v98 = vrot.slane %v93, %v97
    %v116 = vunpack.c.l.b16 %v77
    %v117 = vunpack.c.l.b16 %v78
    %v118 = vunpack.c.l.b16 %v79
    %v119 = vunpack.c.l.b16 %v80
    %v120 = vunpack.c.l.b16 %v81
    %v121 = vunpack.c.l.b16 %v82
    %v122 = vunpack.c.l.b16 %v83
    %v123 = vunpack.c.l.b16 %v84
    %v124 = vunpack.c.l.b16 %v85
    %v125 = vunpack.c.l.b16 %v86
    %v126 = vunpack.c.l.b16 %v87
    %v127 = vunpack.c.l.b16 %v88
    %v128 = vunpack.c.l.b16 %v89
    %v129 = vunpack.c.l.b16 %v90
    %v130 = vunpack.c.l.b16 %v91
    %v131 = vunpack.c.l.b16 %v92
    %v132 = vpack.c.b16 %v117, %v116
    %v133 = vpack.c.b16 %v119, %v118
    %v134 = vpack.c.b16 %v121, %v120
    %v135 = vpack.c.b16 %v123, %v122
    %v136 = vpack.c.b16 %v125, %v124
    %v137 = vpack.c.b16 %v127, %v126
    %v138 = vpack.c.b16 %v129, %v128
    %v139 = vpack.c.b16 %v131, %v130
    %148 = vmatprep.subr.bf16.mxu0 0
    %149 = vmatpush1.bf16.msra.mxu0 %v132
    %150 = vmatprep.subr.bf16.mxu0 0
    %151 = vmatpush1.bf16.msra.mxu0 %v133
    %152 = vmatprep.subr.bf16.mxu0 0
    %153 = vmatpush1.bf16.msra.mxu0 %v134
    %154 = vmatprep.subr.bf16.mxu0 0
    %155 = vmatpush1.bf16.msra.mxu0 %v135
    %156 = vmatprep.subr.bf16.mxu0 0
    %157 = vmatpush1.bf16.msra.mxu0 %v136
    %158 = vmatprep.subr.bf16.mxu0 0
    %159 = vmatpush1.bf16.msra.mxu0 %v137
    %160 = vmatprep.subr.bf16.mxu0 0
    %161 = vmatpush1.bf16.msra.mxu0 %v138
    %162 = vmatprep.subr.bf16.mxu0 0
    %163 = vmatpush1.bf16.msra.mxu0 %v139
    %164 = vmatprep.subr.bf16.mxu0 0
    %165 = vmatpush1.bf16.msra.mxu0 0
    %166 = vmatprep.subr.bf16.mxu0 0
    %167 = vmatpush1.bf16.msra.mxu0 0
    %168 = vmatprep.subr.bf16.mxu0 0
    %169 = vmatpush1.bf16.msra.mxu0 0
    %170 = vmatprep.subr.bf16.mxu0 0
    %171 = vmatpush1.bf16.msra.mxu0 0
    %172 = vmatprep.subr.bf16.mxu0 0
    %173 = vmatpush1.bf16.msra.mxu0 0
    %174 = vmatprep.subr.bf16.mxu0 0
    %175 = vmatpush1.bf16.msra.mxu0 0
    %176 = vmatprep.subr.bf16.mxu0 0
    %177 = vmatpush1.bf16.msra.mxu0 0
    %178 = vmatprep.subr.bf16.mxu0 0
    %179 = vmatpush1.bf16.msra.mxu0 0
    %180 = vmatprep.mubr.bf16.mxu0 0
    %181 = vmatmul.mubr.bf16.gmra.mrb[0].mxu0 %v76
    %v182 = vpop.f32.mrb[0].mxu0
    %v183 = vadd.f32 %v98, %v182
    %v184 = vpop.f32.mrb[0].mxu0
    %v185 = vpop.f32.mrb[0].mxu0
    %v186 = vadd.f32 %v98, %v185
    %v187 = vpop.f32.mrb[0].mxu0
    %188 = vdwg.mxu0
    %v189 = vpack.c.bf16 %v186, %v183
    %v190 = vld [vmem:[#allocation4] sm:$0xf]
    %v191 = vld [vmem:[#allocation4 + $0x4] sm:$0xf]
    %v192 = vld [vmem:[#allocation4 + $0x8] sm:$0xf]
    %v193 = vld [vmem:[#allocation4 + $0xc] sm:$0xf]
    %v194 = vld [vmem:[#allocation4 + $0x10] sm:$0xf]
    %v195 = vld [vmem:[#allocation4 + $0x14] sm:$0xf]
    %v196 = vld [vmem:[#allocation4 + $0x18] sm:$0xf]
    %v197 = vld [vmem:[#allocation4 + $0x1c] sm:$0xf]
    %v198 = vld [vmem:[#allocation4 + $0x20] sm:$0xf]
    %v199 = vld [vmem:[#allocation4 + $0x24] sm:$0xf]
    %v200 = vld [vmem:[#allocation4 + $0x28] sm:$0xf]
    %v201 = vld [vmem:[#allocation4 + $0x2c] sm:$0xf]
    %v202 = vld [vmem:[#allocation4 + $0x30] sm:$0xf]
    %v203 = vld [vmem:[#allocation4 + $0x34] sm:$0xf]
    %v204 = vld [vmem:[#allocation4 + $0x38] sm:$0xf]
    %v205 = vld [vmem:[#allocation4 + $0x3c] sm:$0xf]
    %v206 = vld [vmem:[%s4] sm:$0x1]
    %v208 = vlaneseq
    %v209 = vshrl.u32 %v208, 7
    %v210 = vsub.s32 0, %v209
    %v211 = vrot.slane %v206, %v210
    %v229 = vunpack.c.l.b16 %v190
    %v230 = vunpack.c.l.b16 %v191
    %v231 = vunpack.c.l.b16 %v192
    %v232 = vunpack.c.l.b16 %v193
    %v233 = vunpack.c.l.b16 %v194
    %v234 = vunpack.c.l.b16 %v195
    %v235 = vunpack.c.l.b16 %v196
    %v236 = vunpack.c.l.b16 %v197
    %v237 = vunpack.c.l.b16 %v198
    %v238 = vunpack.c.l.b16 %v199
    %v239 = vunpack.c.l.b16 %v200
    %v240 = vunpack.c.l.b16 %v201
    %v241 = vunpack.c.l.b16 %v202
    %v242 = vunpack.c.l.b16 %v203
    %v243 = vunpack.c.l.b16 %v204
    %v244 = vunpack.c.l.b16 %v205
    %v245 = vpack.c.b16 %v230, %v229
    %v246 = vpack.c.b16 %v232, %v231
    %v247 = vpack.c.b16 %v234, %v233
    %v248 = vpack.c.b16 %v236, %v235
    %v249 = vpack.c.b16 %v238, %v237
    %v250 = vpack.c.b16 %v240, %v239
    %v251 = vpack.c.b16 %v242, %v241
    %v252 = vpack.c.b16 %v244, %v243
    %261 = vmatprep.subr.bf16.mxu0 0
    %262 = vmatpush1.bf16.msra.mxu0 %v245
    %263 = vmatprep.subr.bf16.mxu0 0
    %264 = vmatpush1.bf16.msra.mxu0 %v246
    %265 = vmatprep.subr.bf16.mxu0 0
    %266 = vmatpush1.bf16.msra.mxu0 %v247
    %267 = vmatprep.subr.bf16.mxu0 0
    %268 = vmatpush1.bf16.msra.mxu0 %v248
    %269 = vmatprep.subr.bf16.mxu0 0
    %270 = vmatpush1.bf16.msra.mxu0 %v249
    %271 = vmatprep.subr.bf16.mxu0 0
    %272 = vmatpush1.bf16.msra.mxu0 %v250
    %273 = vmatprep.subr.bf16.mxu0 0
    %274 = vmatpush1.bf16.msra.mxu0 %v251
    %275 = vmatprep.subr.bf16.mxu0 0
    %276 = vmatpush1.bf16.msra.mxu0 %v252
    %277 = vmatprep.subr.bf16.mxu0 0
    %278 = vmatpush1.bf16.msra.mxu0 0
    %279 = vmatprep.subr.bf16.mxu0 0
    %280 = vmatpush1.bf16.msra.mxu0 0
    %281 = vmatprep.subr.bf16.mxu0 0
    %282 = vmatpush1.bf16.msra.mxu0 0
    %283 = vmatprep.subr.bf16.mxu0 0
    %284 = vmatpush1.bf16.msra.mxu0 0
    %285 = vmatprep.subr.bf16.mxu0 0
    %286 = vmatpush1.bf16.msra.mxu0 0
    %287 = vmatprep.subr.bf16.mxu0 0
    %288 = vmatpush1.bf16.msra.mxu0 0
    %289 = vmatprep.subr.bf16.mxu0 0
    %290 = vmatpush1.bf16.msra.mxu0 0
    %291 = vmatprep.subr.bf16.mxu0 0
    %292 = vmatpush1.bf16.msra.mxu0 0
    %293 = vmatprep.mubr.bf16.mxu0 0
    %294 = vmatmul.mubr.bf16.gmra.mrb[0].mxu0 %v189
    %v295 = vpop.f32.mrb[0].mxu0
    %v296 = vadd.f32 %v211, %v295
    %v297 = vpop.f32.mrb[0].mxu0
    %v298 = vpop.f32.mrb[0].mxu0
    %v299 = vadd.f32 %v211, %v298
    %v300 = vpop.f32.mrb[0].mxu0
    %301 = vdwg.mxu0
    %v302 = vmax.f32 %v296, 0.0
    %v303 = vmax.f32 %v299, 0.0
    %v304 = vpack.c.bf16 %v303, %v302
    %v305 = vld [vmem:[#allocation6] sm:$0xf]
    %v306 = vld [vmem:[#allocation6 + $0x4] sm:$0xf]
    %v307 = vld [vmem:[#allocation6 + $0x8] sm:$0xf]
    %v308 = vld [vmem:[#allocation6 + $0xc] sm:$0xf]
    %v309 = vld [vmem:[#allocation6 + $0x10] sm:$0xf]
    %v310 = vld [vmem:[#allocation6 + $0x14] sm:$0xf]
    %v311 = vld [vmem:[#allocation6 + $0x18] sm:$0xf]
    %v312 = vld [vmem:[#allocation6 + $0x1c] sm:$0xf]
    %v313 = vld [vmem:[#allocation6 + $0x20] sm:$0xf]
    %v314 = vld [vmem:[#allocation6 + $0x24] sm:$0xf]
    %v315 = vld [vmem:[#allocation6 + $0x28] sm:$0xf]
    %v316 = vld [vmem:[#allocation6 + $0x2c] sm:$0xf]
    %v317 = vld [vmem:[#allocation6 + $0x30] sm:$0xf]
    %v318 = vld [vmem:[#allocation6 + $0x34] sm:$0xf]
    %v319 = vld [vmem:[#allocation6 + $0x38] sm:$0xf]
    %v320 = vld [vmem:[#allocation6 + $0x3c] sm:$0xf]
    %v321 = vld [vmem:[%s6] sm:$0x1]
    %v323 = vlaneseq
    %v324 = vshrl.u32 %v323, 7
    %v325 = vsub.s32 0, %v324
    %v326 = vrot.slane %v321, %v325
    %v344 = vunpack.c.l.b16 %v305
    %v345 = vunpack.c.l.b16 %v306
    %v346 = vunpack.c.l.b16 %v307
    %v347 = vunpack.c.l.b16 %v308
    %v348 = vunpack.c.l.b16 %v309
    %v349 = vunpack.c.l.b16 %v310
    %v350 = vunpack.c.l.b16 %v311
    %v351 = vunpack.c.l.b16 %v312
    %v352 = vunpack.c.l.b16 %v313
    %v353 = vunpack.c.l.b16 %v314
    %v354 = vunpack.c.l.b16 %v315
    %v355 = vunpack.c.l.b16 %v316
    %v356 = vunpack.c.l.b16 %v317
    %v357 = vunpack.c.l.b16 %v318
    %v358 = vunpack.c.l.b16 %v319
    %v359 = vunpack.c.l.b16 %v320
    %v360 = vpack.c.b16 %v345, %v344
    %v361 = vpack.c.b16 %v347, %v346
    %v362 = vpack.c.b16 %v349, %v348
    %v363 = vpack.c.b16 %v351, %v350
    %v364 = vpack.c.b16 %v353, %v352
    %v365 = vpack.c.b16 %v355, %v354
    %v366 = vpack.c.b16 %v357, %v356
    %v367 = vpack.c.b16 %v359, %v358
    %376 = vmatprep.subr.bf16.mxu0 0
    %377 = vmatpush1.bf16.msra.mxu0 %v360
    %378 = vmatprep.subr.bf16.mxu0 0
    %379 = vmatpush1.bf16.msra.mxu0 %v361
    %380 = vmatprep.subr.bf16.mxu0 0
    %381 = vmatpush1.bf16.msra.mxu0 %v362
    %382 = vmatprep.subr.bf16.mxu0 0
    %383 = vmatpush1.bf16.msra.mxu0 %v363
    %384 = vmatprep.subr.bf16.mxu0 0
    %385 = vmatpush1.bf16.msra.mxu0 %v364
    %386 = vmatprep.subr.bf16.mxu0 0
    %387 = vmatpush1.bf16.msra.mxu0 %v365
    %388 = vmatprep.subr.bf16.mxu0 0
    %389 = vmatpush1.bf16.msra.mxu0 %v366
    %390 = vmatprep.subr.bf16.mxu0 0
    %391 = vmatpush1.bf16.msra.mxu0 %v367
    %392 = vmatprep.subr.bf16.mxu0 0
    %393 = vmatpush1.bf16.msra.mxu0 0
    %394 = vmatprep.subr.bf16.mxu0 0
    %395 = vmatpush1.bf16.msra.mxu0 0
    %396 = vmatprep.subr.bf16.mxu0 0
    %397 = vmatpush1.bf16.msra.mxu0 0
    %398 = vmatprep.subr.bf16.mxu0 0
    %399 = vmatpush1.bf16.msra.mxu0 0
    %400 = vmatprep.subr.bf16.mxu0 0
    %401 = vmatpush1.bf16.msra.mxu0 0
    %402 = vmatprep.subr.bf16.mxu0 0
    %403 = vmatpush1.bf16.msra.mxu0 0
    %404 = vmatprep.subr.bf16.mxu0 0
    %405 = vmatpush1.bf16.msra.mxu0 0
    %406 = vmatprep.subr.bf16.mxu0 0
    %407 = vmatpush1.bf16.msra.mxu0 0
    %408 = vmatprep.mubr.bf16.mxu0 0
    %409 = vmatmul.mubr.bf16.gmra.mrb[0].mxu0 %v304
    %v410 = vpop.f32.mrb[0].mxu0
    %v411 = vadd.f32 %v326, %v410
    %v412 = vpop.f32.mrb[0].mxu0
    %v413 = vpop.f32.mrb[0].mxu0
    %v414 = vadd.f32 %v326, %v413
    %v415 = vpop.f32.mrb[0].mxu0
    %416 = vdwg.mxu0
    %vm417 = vcmp.ge.f32.partialorder %v411, 0.0
    %vm418 = vcmp.ge.f32.partialorder %v414, 0.0
    %v419 = vmul.f32 %v411, 0.01
    %v420 = vmul.f32 %v414, 0.01
    %v421 = vsel %vm417, %v411, %v419
    %v422 = vsel %vm418, %v414, %v420
    %v423 = vpack.c.bf16 %v422, %v421
    %v424 = vld [vmem:[%s7] sm:$0xf]
    %v425 = vld [vmem:[%s7 + $0x4] sm:$0xf]
    %v426 = vld [vmem:[%s7 + $0x8] sm:$0xf]
    %v427 = vld [vmem:[%s7 + $0xc] sm:$0xf]
    %v428 = vld [vmem:[%s7 + $0x10] sm:$0xf]
    %v429 = vld [vmem:[%s7 + $0x14] sm:$0xf]
    %v430 = vld [vmem:[%s7 + $0x18] sm:$0xf]
    %v431 = vld [vmem:[%s7 + $0x1c] sm:$0xf]
    %v432 = vld [vmem:[%s7 + $0x20] sm:$0xf]
    %v433 = vld [vmem:[%s7 + $0x24] sm:$0xf]
    %v434 = vld [vmem:[%s7 + $0x28] sm:$0xf]
    %v435 = vld [vmem:[%s7 + $0x2c] sm:$0xf]
    %v436 = vld [vmem:[%s7 + $0x30] sm:$0xf]
    %v437 = vld [vmem:[%s7 + $0x34] sm:$0xf]
    %v438 = vld [vmem:[%s7 + $0x38] sm:$0xf]
    %v439 = vld [vmem:[%s7 + $0x3c] sm:$0xf]
    %v440 = vld [vmem:[%s8] sm:$0x1]
    %v442 = vlaneseq
    %v443 = vshrl.u32 %v442, 7
    %v444 = vsub.s32 0, %v443
    %v445 = vrot.slane %v440, %v444
    %v463 = vunpack.c.l.b16 %v424
    %v464 = vunpack.c.l.b16 %v425
    %v465 = vunpack.c.l.b16 %v426
    %v466 = vunpack.c.l.b16 %v427
    %v467 = vunpack.c.l.b16 %v428
    %v468 = vunpack.c.l.b16 %v429
    %v469 = vunpack.c.l.b16 %v430
    %v470 = vunpack.c.l.b16 %v431
    %v471 = vunpack.c.l.b16 %v432
    %v472 = vunpack.c.l.b16 %v433
    %v473 = vunpack.c.l.b16 %v434
    %v474 = vunpack.c.l.b16 %v435
    %v475 = vunpack.c.l.b16 %v436
    %v476 = vunpack.c.l.b16 %v437
    %v477 = vunpack.c.l.b16 %v438
    %v478 = vunpack.c.l.b16 %v439
    %v479 = vpack.c.b16 %v464, %v463
    %v480 = vpack.c.b16 %v466, %v465
    %v481 = vpack.c.b16 %v468, %v467
    %v482 = vpack.c.b16 %v470, %v469
    %v483 = vpack.c.b16 %v472, %v471
    %v484 = vpack.c.b16 %v474, %v473
    %v485 = vpack.c.b16 %v476, %v475
    %v486 = vpack.c.b16 %v478, %v477
    %495 = vmatprep.subr.bf16.mxu0 0
    %496 = vmatpush1.bf16.msra.mxu0 %v479
    %497 = vmatprep.subr.bf16.mxu0 0
    %498 = vmatpush1.bf16.msra.mxu0 %v480
    %499 = vmatprep.subr.bf16.mxu0 0
    %500 = vmatpush1.bf16.msra.mxu0 %v481
    %501 = vmatprep.subr.bf16.mxu0 0
    %502 = vmatpush1.bf16.msra.mxu0 %v482
    %503 = vmatprep.subr.bf16.mxu0 0
    %504 = vmatpush1.bf16.msra.mxu0 %v483
    %505 = vmatprep.subr.bf16.mxu0 0
    %506 = vmatpush1.bf16.msra.mxu0 %v484
    %507 = vmatprep.subr.bf16.mxu0 0
    %508 = vmatpush1.bf16.msra.mxu0 %v485
    %509 = vmatprep.subr.bf16.mxu0 0
    %510 = vmatpush1.bf16.msra.mxu0 %v486
    %511 = vmatprep.subr.bf16.mxu0 0
    %512 = vmatpush1.bf16.msra.mxu0 0
    %513 = vmatprep.subr.bf16.mxu0 0
    %514 = vmatpush1.bf16.msra.mxu0 0
    %515 = vmatprep.subr.bf16.mxu0 0
    %516 = vmatpush1.bf16.msra.mxu0 0
    %517 = vmatprep.subr.bf16.mxu0 0
    %518 = vmatpush1.bf16.msra.mxu0 0
    %519 = vmatprep.subr.bf16.mxu0 0
    %520 = vmatpush1.bf16.msra.mxu0 0
    %521 = vmatprep.subr.bf16.mxu0 0
    %522 = vmatpush1.bf16.msra.mxu0 0
    %523 = vmatprep.subr.bf16.mxu0 0
    %524 = vmatpush1.bf16.msra.mxu0 0
    %525 = vmatprep.subr.bf16.mxu0 0
    %526 = vmatpush1.bf16.msra.mxu0 0
    %527 = vmatprep.mubr.bf16.mxu0 0
    %528 = vmatmul.mubr.bf16.gmra.mrb[0].mxu0 %v423
    %v529 = vpop.f32.mrb[0].mxu0
    %v530 = vadd.f32 %v445, %v529
    %v531 = vpop.f32.mrb[0].mxu0
    %v532 = vpop.f32.mrb[0].mxu0
    %v533 = vadd.f32 %v445, %v532
    %v534 = vpop.f32.mrb[0].mxu0
    %535 = vdwg.mxu0
    %536 = vmax.xlane.f32.xlu0 %v530
    %v537 = vpop.xlane.xlu0 %536
    %538 = vmax.xlane.f32.xlu0 %v533
    %v539 = vpop.xlane.xlu0 %538
    %v540 = vsub.f32 %v530, %v537
    %v541 = vsub.f32 %v533, %v539
    %v542 = vmul.f32 %v540, 1.442695
    %v543 = vpow.pop %v542
    %v544 = vmul.f32 %v541, 1.442695
    %v545 = vpow.pop %v544
    %546 = vadd.xlane.f32.xlu0 %v543
    %v547 = vpop.xlane.xlu0 %546
    %548 = vadd.xlane.f32.xlu0 %v545
    %v549 = vpop.xlane.xlu0 %548
    %v550 = vrcp.pop %v547
    %v551 = vmul.f32 %v543, %v550
    %v552 = vrcp.pop %v549
    %v553 = vmul.f32 %v545, %v552
    %554 = vst [vmem:[%s9] sm:$0xff] %v551
    %555 = vst [vmem:[%s9 + $0x8] sm:$0xff] %v553
    // Predicated region
    $region50: #{_lambda_.1} parent=1 // pred_check
      _
    $region51: #{_lambda_.1} parent=1 // pred_check_branch
      %557 = sbr.rel (0) target = $region53
    $region52: #{_lambda_.1} parent=1 // pred_region
      _
    $region53: #{_lambda_.1} parent=1 // pred_fallthru
      _
    // Predicated region
    $region54: #{_lambda_.1} parent=1 // pred_check
      _
    $region55: #{_lambda_.1} parent=1 // pred_check_branch
      %559 = sbr.rel (0) target = $region57
    $region56: #{_lambda_.1} parent=1 // pred_region
      _
    $region57: #{_lambda_.1} parent=1 // pred_fallthru
      _
    %560 = vsyncpa [#allocation3], 1
    %561 = vsyncpa [#allocation5], 1

</llo_original>
